<compile_context>
chip_gen: v6e
topology: v6e:2x2x1
jax: 0.10.0
libtpu: 0.0.40
codegen_flags: <defaults>
</compile_context>

<pallas_src>
import math

import numpy as np

import jax
import jax.numpy as jnp
from jax.experimental import pallas as pl
from jax.experimental.pallas import tpu as pltpu


# --------------------------------------------------------------------------- #
# Host-side construction of the pooling operator
# --------------------------------------------------------------------------- #
def _pool_bins(scales, H, W):
    """PyTorch AdaptiveAvgPool2d bin boundaries for every output cell."""
    bins = []
    for s in scales:
        for i in range(s):
            sh, eh = (i * H) // s, math.ceil((i + 1) * H / s)
            for j in range(s):
                sw, ew = (j * W) // s, math.ceil((j + 1) * W / s)
                bins.append((sh, eh, sw, ew))
    return bins


def _build_pool_mask_and_scale(scales, H, W):
    """Returns:
       P     [H*W, N] numpy f32 : 0/1 bin membership mask (exact in bf16 too)
       scale [1,  N ] numpy f32 : per-column 1/(bin area) averaging factor
    """
    bins = _pool_bins(scales, H, W)
    N = len(bins)
    P = np.zeros((H * W, N), dtype=np.float32)
    scale = np.zeros((1, N), dtype=np.float32)
    for col, (sh, eh, sw, ew) in enumerate(bins):
        m = np.zeros((H, W), dtype=np.float32)
        m[sh:eh, sw:ew] = 1.0
        P[:, col] = m.reshape(-1)
        scale[0, col] = 1.0 / float((eh - sh) * (ew - sw))
    return P, scale


def _vmem_capacity_bytes():
    try:
        return int(pltpu.get_tpu_info().vmem_capacity_bytes)
    except Exception:
        return 64 * 1024 * 1024  # conservative fallback (v7x per-TC size)


# --------------------------------------------------------------------------- #
# Kernels
# --------------------------------------------------------------------------- #
def _msp_resident_kernel(x_ref, p_ref, s_ref, o_ref):
    # One MXU matmul per M-tile; f32 accumulation; f32 averaging weights
    # applied before the final downcast.  The VPU multiply hides under the
    # HBM-bound X DMA.
    acc = jnp.dot(x_ref[...], p_ref[...], preferred_element_type=jnp.float32)
    o_ref[...] = (acc * s_ref[...]).astype(o_ref.dtype)


def _make_ktiled_kernel(HW, TK):
    rem = HW % TK

    def kernel(x_ref, p_ref, s_ref, o_ref, acc_ref):
        k = pl.program_id(1)

        @pl.when(k == 0)
        def _init():
            acc_ref[...] = jnp.zeros_like(acc_ref)

        x = x_ref[...]
        p = p_ref[...]
        if rem != 0:
            # Last K tile is partial: zero BOTH operands' out-of-range region so
            # stale VMEM contents (possibly NaN bit patterns) cannot leak into
            # the accumulator.  For full tiles the where() is an identity.
            valid = HW - k * TK
            colx = jax.lax.broadcasted_iota(jnp.int32, x.shape, 1)
            x = jnp.where(colx < valid, x, jnp.zeros_like(x))
            rowp = jax.lax.broadcasted_iota(jnp.int32, p.shape, 0)
            p = jnp.where(rowp < valid, p, jnp.zeros_like(p))

        acc_ref[...] += jnp.dot(x, p, preferred_element_type=jnp.float32)

        @pl.when(k == pl.num_programs(1) - 1)
        def _done():
            o_ref[...] = (acc_ref[...] * s_ref[...]).astype(o_ref.dtype)

    return kernel


# --------------------------------------------------------------------------- #
# Wrapper
# --------------------------------------------------------------------------- #
def multi_scale_pooling(feature, scales):
    """feature: [B, C, H, W] -> [B, C, sum(s*s for s in scales)] (same dtype)."""
    B, C, H, W = feature.shape
    M, HW = B * C, H * W
    dtype = feature.dtype
    itemsize = jnp.dtype(dtype).itemsize

    P_np, scale_np = _build_pool_mask_and_scale(scales, H, W)
    N = P_np.shape[1]
    P = jnp.asarray(P_np, dtype=dtype)   # 0/1 mask: exact in bf16 and f32
    scale = jnp.asarray(scale_np)        # f32 averaging weights
    x_flat = feature.reshape(M, HW)      # contiguous view, no copy

    # ---- per-generation VMEM budget ------------------------------------- #
    cap = _vmem_capacity_bytes()
    vmem_limit = max(32 * 2**20, min(100 * 2**20, int(cap * 0.85)))
    budget = int(vmem_limit * 0.85)

    p_bytes = HW * N * itemsize                 # P, single-buffered (resident)
    s_bytes = 4 * N                             # scale row, single-buffered
    row_bytes = 2 * (HW + N) * itemsize         # double-buffered X row + out row
    avail = budget - p_bytes - s_bytes
    tm_cap = avail // row_bytes if avail > 0 else 0

    cost = pl.CostEstimate(
        flops=2 * M * HW * N,
        transcendentals=0,
        bytes_accessed=(M * HW + HW * N + M * N) * itemsize + 4 * N,
    )

    def _const_spec(shape, index_map, single_buffer):
        # Constant-index_map operand: single-buffer it to save VMEM.
        if single_buffer:
            return pl.BlockSpec(shape, index_map, pipeline_mode=pl.Buffered(1))
        return pl.BlockSpec(shape, index_map)

    def run(single_buffer_resident):
        if tm_cap >= min(M, 256):
            # ---------------- resident-P path: grid over M only ----------- #
            target_tile_bytes = 8 * 2**20       # big X tiles -> HBM roofline
            tm_target = max(256, target_tile_bytes // (HW * itemsize))
            TM = min(M, tm_cap, tm_target)
            if TM < M:
                TM = max(8, (TM // 8) * 8)      # sublane multiple when tiling
            grid = (pl.cdiv(M, TM),)
            grid_spec = pltpu.PrefetchScalarGridSpec(
                num_scalar_prefetch=0,
                grid=grid,
                in_specs=[
                    pl.BlockSpec((TM, HW), lambda i: (i, 0)),        # X, pipelined
                    _const_spec((HW, N), lambda i: (0, 0), single_buffer_resident),
                    _const_spec((1, N), lambda i: (0, 0), single_buffer_resident),
                ],
                out_specs=pl.BlockSpec((TM, N), lambda i: (i, 0)),
            )
            kernel = _msp_resident_kernel
            scratch = ()
            dims = ("parallel",)
        else:
            # --------- K(=H*W)-tiled fallback: P too large for VMEM ------- #
            TM = min(M, 512)
            if TM < M:
                TM = max(8, (TM // 8) * 8)
            acc_bytes = TM * N * 4
            out_bytes = 2 * TM * N * itemsize
            k_avail = budget - acc_bytes - out_bytes - s_bytes
            per_tk = 2 * (TM + N) * itemsize    # double-buffered X col + P row
            TK = max(128, (max(k_avail, 0) // per_tk // 128) * 128)
            if TK >= HW:
                TK = HW
            grid = (pl.cdiv(M, TM), pl.cdiv(HW, TK))
            grid_spec = pltpu.PrefetchScalarGridSpec(
                num_scalar_prefetch=0,
                grid=grid,
                in_specs=[
                    pl.BlockSpec((TM, TK), lambda i, k: (i, k)),
                    pl.BlockSpec((TK, N), lambda i, k: (k, 0)),
                    _const_spec((1, N), lambda i, k: (0, 0), single_buffer_resident),
                ],
                out_specs=pl.BlockSpec((TM, N), lambda i, k: (i, 0)),
                scratch_shapes=[pltpu.VMEM((TM, N), jnp.float32)],
            )
            kernel = _make_ktiled_kernel(HW, TK)
            scratch = None  # already in grid_spec
            dims = ("parallel", "arbitrary")

        del scratch
        return pl.pallas_call(
            kernel,
            out_shape=jax.ShapeDtypeStruct((M, N), dtype),
            grid_spec=grid_spec,
            compiler_params=pltpu.CompilerParams(
                dimension_semantics=dims,
                vmem_limit_bytes=vmem_limit,
            ),
            cost_estimate=cost,
        )(x_flat, P, scale)

    try:
        out_flat = run(single_buffer_resident=True)
    except Exception:
        # Safety net: retry with default (double) buffering if this build
        # rejects pl.Buffered(1) for resident operands.
        out_flat = run(single_buffer_resident=False)

    return out_flat.reshape(B, C, N)


# --------------------------------------------------------------------------- #
# Pure-JAX reference (exact PyTorch AdaptiveAvgPool2d semantics, incl. the
# floor/ceil non-divisible bin path) and self-test
# --------------------------------------------------------------------------- #
def _reference(feature, scales):
    B, C, H, W = feature.shape
    outs = []
    for s in scales:
        cells = []
        for i in range(s):
            sh, eh = (i * H) // s, math.ceil((i + 1) * H / s)
            for j in range(s):
                sw, ew = (j * W) // s, math.ceil((j + 1) * W / s)
                cells.append(feature[:, :, sh:eh, sw:ew].mean(axis=(2, 3)))
        outs.append(jnp.stack(cells, axis=-1))
    return jnp.concatenate(outs, axis=2)


if __name__ == "__main__":
    key = jax.random.PRNGKey(0)
    B, C, H, W = 2, 4, 16, 16
    scales = (1, 2, 3, 4)  # scale 3 exercises the non-divisible (floor/ceil) bins

    feature = jax.random.normal(key, (B, C, H, W), dtype=jnp.float32)

    out = multi_scale_pooling(feature, scales)
    out = jax.block_until_ready(out)

    N = sum(s * s for s in scales)
    ref = _reference(feature, scales)
    assert out.shape == (B, C, N), out.shape
    assert out.dtype == feature.dtype, out.dtype
    err = float(jnp.max(jnp.abs(out - ref)))
    assert err < 1e-4, err

    print("KERNEL_OK")
</pallas_src>

<mosaic_0001>
module attributes {stable_mosaic.version = 11 : i64} {
  func.func @_msp_resident_kernel(%arg0: i32, %arg1: memref<8x256xf32, #tpu.memory_space<vmem>>, %arg2: memref<256x30xf32, #tpu.memory_space<vmem>>, %arg3: memref<1x30xf32, #tpu.memory_space<vmem>>, %arg4: memref<8x30xf32, #tpu.memory_space<vmem>>) attributes {dimension_semantics = [#tpu.dimension_semantics<parallel>], iteration_bounds = array<i64: 1>, scalar_prefetch = 0 : i64, scratch_operands = 0 : i64, tpu.core_type = #tpu.core_type<tc>, window_params = [{transform_indices = @transform_0, window_bounds = array<i64: 8, 256>}, {pipeline_mode = #tpu.pipeline_mode<synchronous>, transform_indices = @transform_1, window_bounds = array<i64: 256, 30>}, {pipeline_mode = #tpu.pipeline_mode<synchronous>, transform_indices = @transform_2, window_bounds = array<i64: 1, 30>}, {transform_indices = @transform_3, window_bounds = array<i64: 8, 30>}]} {
    %c0 = arith.constant 0 : index
    %c0_0 = arith.constant 0 : index
    %0 = vector.load %arg1[%c0, %c0_0] : memref<8x256xf32, #tpu.memory_space<vmem>>, vector<8x256xf32>
    %c0_1 = arith.constant 0 : index
    %c0_2 = arith.constant 0 : index
    %1 = vector.load %arg2[%c0_1, %c0_2] : memref<256x30xf32, #tpu.memory_space<vmem>>, vector<256x30xf32>
    %cst = arith.constant dense<0.000000e+00> : vector<8x30xf32>
    %2 = tpu.matmul %0, %1, %cst {dimension_numbers = #tpu.dot_dimension_numbers<[1], [0], [0], [1], [0, 0, 1, 1], [], []>} : vector<8x256xf32>, vector<256x30xf32>, vector<8x30xf32> -> vector<8x30xf32>
    %c0_3 = arith.constant 0 : index
    %c0_4 = arith.constant 0 : index
    %3 = vector.load %arg3[%c0_3, %c0_4] : memref<1x30xf32, #tpu.memory_space<vmem>>, vector<1x30xf32>
    %4 = vector.broadcast %3 : vector<1x30xf32> to vector<8x30xf32>
    %5 = arith.mulf %2, %4 : vector<8x30xf32>
    %c0_5 = arith.constant 0 : index
    %c0_6 = arith.constant 0 : index
    %6 = vector.load %arg4[%c0_5, %c0_6] : memref<8x30xf32, #tpu.memory_space<vmem>>, vector<8x30xf32>
    tpu.vector_store %arg4[%c0_5, %c0_6], %5 {strides = array<i32>} : memref<8x30xf32, #tpu.memory_space<vmem>>, vector<8x30xf32>,
    return
  }
  func.func @transform_0(%arg0: i32) -> (i32, i32) {
    %c0_i32 = arith.constant 0 : i32
    %c0_i32_0 = arith.constant 0 : i32
    return %arg0, %c0_i32 : i32, i32
  }
  func.func @transform_1(%arg0: i32) -> (i32, i32) {
    %c0_i32 = arith.constant 0 : i32
    %c0_i32_0 = arith.constant 0 : i32
    %c0_i32_1 = arith.constant 0 : i32
    return %c0_i32, %c0_i32_0 : i32, i32
  }
  func.func @transform_2(%arg0: i32) -> (i32, i32) {
    %c0_i32 = arith.constant 0 : i32
    %c0_i32_0 = arith.constant 0 : i32
    %c0_i32_1 = arith.constant 0 : i32
    return %c0_i32, %c0_i32_0 : i32, i32
  }
  func.func @transform_3(%arg0: i32) -> (i32, i32) {
    %c0_i32 = arith.constant 0 : i32
    %c0_i32_0 = arith.constant 0 : i32
    return %arg0, %c0_i32 : i32, i32
  }
}

module attributes {stable_mosaic.version = 11 : i64} {
  func.func @_msp_resident_kernel(%arg0: i32, %arg1: memref<8x256xf32, #tpu.memory_space<vmem>>, %arg2: memref<256x30xf32, #tpu.memory_space<vmem>>, %arg3: memref<1x30xf32, #tpu.memory_space<vmem>>, %arg4: memref<8x30xf32, #tpu.memory_space<vmem>>) attributes {dimension_semantics = [#tpu.dimension_semantics<parallel>], iteration_bounds = array<i64: 1>, scalar_prefetch = 0 : i64, scratch_operands = 0 : i64, tpu.core_type = #tpu.core_type<tc>, window_params = [{transform_indices = @transform_0, window_bounds = array<i64: 8, 256>}, {pipeline_mode = #tpu.pipeline_mode<synchronous>, transform_indices = @transform_1, window_bounds = array<i64: 256, 30>}, {pipeline_mode = #tpu.pipeline_mode<synchronous>, transform_indices = @transform_2, window_bounds = array<i64: 1, 30>}, {transform_indices = @transform_3, window_bounds = array<i64: 8, 30>}]} {
    %c0 = arith.constant 0 : index
    %c0_0 = arith.constant 0 : index
    %0 = vector.load %arg1[%c0, %c0_0] : memref<8x256xf32, #tpu.memory_space<vmem>>, vector<8x256xf32>
    %c0_1 = arith.constant 0 : index
    %c0_2 = arith.constant 0 : index
    %1 = vector.load %arg2[%c0_1, %c0_2] : memref<256x30xf32, #tpu.memory_space<vmem>>, vector<256x30xf32>
    %cst = arith.constant dense<0.000000e+00> : vector<8x30xf32>
    %2 = tpu.matmul %0, %1, %cst {dimension_numbers = #tpu.dot_dimension_numbers<[1], [0], [0], [1], [0, 0, 1, 1], [], []>} : vector<8x256xf32>, vector<256x30xf32>, vector<8x30xf32> -> vector<8x30xf32>
    %c0_3 = arith.constant 0 : index
    %c0_4 = arith.constant 0 : index
    %3 = vector.load %arg3[%c0_3, %c0_4] : memref<1x30xf32, #tpu.memory_space<vmem>>, vector<1x30xf32>
    %4 = vector.broadcast %3 : vector<1x30xf32> to vector<8x30xf32>
    %5 = arith.mulf %2, %4 : vector<8x30xf32>
    %c0_5 = arith.constant 0 : index
    %c0_6 = arith.constant 0 : index
    %6 = vector.load %arg4[%c0_5, %c0_6] : memref<8x30xf32, #tpu.memory_space<vmem>>, vector<8x30xf32>
    tpu.vector_store %arg4[%c0_5, %c0_6], %5 {strides = array<i32>} : memref<8x30xf32, #tpu.memory_space<vmem>>, vector<8x30xf32>,
    return
  }
  func.func @transform_0(%arg0: i32) -> (i32, i32) {
    %c0_i32 = arith.constant 0 : i32
    %c0_i32_0 = arith.constant 0 : i32
    return %arg0, %c0_i32 : i32, i32
  }
  func.func @transform_1(%arg0: i32) -> (i32, i32) {
    %c0_i32 = arith.constant 0 : i32
    %c0_i32_0 = arith.constant 0 : i32
    %c0_i32_1 = arith.constant 0 : i32
    return %c0_i32, %c0_i32_0 : i32, i32
  }
  func.func @transform_2(%arg0: i32) -> (i32, i32) {
    %c0_i32 = arith.constant 0 : i32
    %c0_i32_0 = arith.constant 0 : i32
    %c0_i32_1 = arith.constant 0 : i32
    return %c0_i32, %c0_i32_0 : i32, i32
  }
  func.func @transform_3(%arg0: i32) -> (i32, i32) {
    %c0_i32 = arith.constant 0 : i32
    %c0_i32_0 = arith.constant 0 : i32
    return %arg0, %c0_i32 : i32, i32
  }
}

</mosaic_0001>

<llo_original>
// kernel: tpu_custom_call.1
$region0: #{tpu_custom_call.1}
  #allocation0 [shape = 'u32[]', space=smem, size = 0x4, offset = 0x4, fixed_abs, tag = 'smem constant byte address 0x4 - core index']
  #allocation1 [shape = 'u32[144,128]{1,0:T(1,128)}', space=vmem, size = 0x12000, scoped, tag = 'internal scratch']
  %s0 = inlined_call_operand.vmem [shape: f32[8,256], index: 0, kind: input, shape index: {}]
  %s1 = inlined_call_operand.vmem [shape: f32[256,30], index: 1, kind: input, shape index: {}]
  %s2 = inlined_call_operand.vmem [shape: f32[1,30], index: 2, kind: input, shape index: {}]
  %s3 = inlined_call_operand.hbm [shape: f32[8,30], index: 3, kind: output, shape index: {}]
  %s4 = sld [smem:[#allocation0]]
  $region22: #{tpu_custom_call.1} parent=0
    _
  %s6 = ssub.s32 1, %s4
  %s7 = scalar_select 0, %s6, %s4
  $region1: #{tpu_custom_call.1} parent=0
    #allocation2 [shape = 'u8[4096]{0}', space=vmem, size = 0x1000, scoped, tag = 'output window, operand 0, single buffered']
    #allocation3 [shape = 's32[1]{0}', space=sflag, size = 0x4, scoped, tag = 'scoped memory for tpu_custom_call.1']
    %8 = vsyncpa [#allocation3], 0
    // Predicated region
    $region2: #{tpu_custom_call.1} parent=1 // pred_check
      _
    $region3: #{tpu_custom_call.1} parent=1 // pred_check_branch
      %10 = sbr.rel (0) target = $region5
    $region4: #{tpu_custom_call.1} parent=1 // pred_region
      _
    $region5: #{tpu_custom_call.1} parent=1 // pred_fallthru
      _
    // Predicated region
    $region6: #{tpu_custom_call.1} parent=1 // pred_check
      _
    $region7: #{tpu_custom_call.1} parent=1 // pred_check_branch
      %12 = sbr.rel (0) target = $region9
    $region8: #{tpu_custom_call.1} parent=1 // pred_region
      _
    $region9: #{tpu_custom_call.1} parent=1 // pred_fallthru
      _
    // Predicated region
    $region10: #{tpu_custom_call.1} parent=1 // pred_check
      _
    $region11: #{tpu_custom_call.1} parent=1 // pred_check_branch
      %14 = sbr.rel (0) target = $region13
    $region12: #{tpu_custom_call.1} parent=1 // pred_region
      _
    $region13: #{tpu_custom_call.1} parent=1 // pred_fallthru
      _
    %v15 = vld [vmem:[%s0] sm:$0xff]
    %v16 = vld [vmem:[%s0 + $0x8] sm:$0xff]
    %v17 = vld [vmem:[%s1] sm:$0xff]
    %v18 = vld [vmem:[%s1 + $0x8] sm:$0xff]
    %v19 = vld [vmem:[%s1 + $0x10] sm:$0xff]
    %v20 = vld [vmem:[%s1 + $0x18] sm:$0xff]
    %v21 = vld [vmem:[%s1 + $0x20] sm:$0xff]
    %v22 = vld [vmem:[%s1 + $0x28] sm:$0xff]
    %v23 = vld [vmem:[%s1 + $0x30] sm:$0xff]
    %v24 = vld [vmem:[%s1 + $0x38] sm:$0xff]
    %v25 = vld [vmem:[%s1 + $0x40] sm:$0xff]
    %v26 = vld [vmem:[%s1 + $0x48] sm:$0xff]
    %v27 = vld [vmem:[%s1 + $0x50] sm:$0xff]
    %v28 = vld [vmem:[%s1 + $0x58] sm:$0xff]
    %v29 = vld [vmem:[%s1 + $0x60] sm:$0xff]
    %v30 = vld [vmem:[%s1 + $0x68] sm:$0xff]
    %v31 = vld [vmem:[%s1 + $0x70] sm:$0xff]
    %v32 = vld [vmem:[%s1 + $0x78] sm:$0xff]
    %v33 = vld [vmem:[%s1 + $0x80] sm:$0xff]
    %v34 = vld [vmem:[%s1 + $0x88] sm:$0xff]
    %v35 = vld [vmem:[%s1 + $0x90] sm:$0xff]
    %v36 = vld [vmem:[%s1 + $0x98] sm:$0xff]
    %v37 = vld [vmem:[%s1 + $0xa0] sm:$0xff]
    %v38 = vld [vmem:[%s1 + $0xa8] sm:$0xff]
    %v39 = vld [vmem:[%s1 + $0xb0] sm:$0xff]
    %v40 = vld [vmem:[%s1 + $0xb8] sm:$0xff]
    %v41 = vld [vmem:[%s1 + $0xc0] sm:$0xff]
    %v42 = vld [vmem:[%s1 + $0xc8] sm:$0xff]
    %v43 = vld [vmem:[%s1 + $0xd0] sm:$0xff]
    %v44 = vld [vmem:[%s1 + $0xd8] sm:$0xff]
    %v45 = vld [vmem:[%s1 + $0xe0] sm:$0xff]
    %v46 = vld [vmem:[%s1 + $0xe8] sm:$0xff]
    %v47 = vld [vmem:[%s1 + $0xf0] sm:$0xff]
    %v48 = vld [vmem:[%s1 + $0xf8] sm:$0xff]
    %49 = vmatprep.subr.mxu0 0.0
    %50 = vmatpush1.msra.mxu0 %v32
    %51 = vmatprep.subr.mxu0 0.0
    %52 = vmatpush1.msra.mxu0 %v31
    %53 = vmatprep.subr.mxu0 0.0
    %54 = vmatpush1.msra.mxu0 %v30
    %55 = vmatprep.subr.mxu0 0.0
    %56 = vmatpush1.msra.mxu0 %v29
    %57 = vmatprep.subr.mxu0 0.0
    %58 = vmatpush1.msra.mxu0 %v28
    %59 = vmatprep.subr.mxu0 0.0
    %60 = vmatpush1.msra.mxu0 %v27
    %61 = vmatprep.subr.mxu0 0.0
    %62 = vmatpush1.msra.mxu0 %v26
    %63 = vmatprep.subr.mxu0 0.0
    %64 = vmatpush1.msra.mxu0 %v25
    %65 = vmatprep.subr.mxu0 0.0
    %66 = vmatpush1.msra.mxu0 %v24
    %67 = vmatprep.subr.mxu0 0.0
    %68 = vmatpush1.msra.mxu0 %v23
    %69 = vmatprep.subr.mxu0 0.0
    %70 = vmatpush1.msra.mxu0 %v22
    %71 = vmatprep.subr.mxu0 0.0
    %72 = vmatpush1.msra.mxu0 %v21
    %73 = vmatprep.subr.mxu0 0.0
    %74 = vmatpush1.msra.mxu0 %v20
    %75 = vmatprep.subr.mxu0 0.0
    %76 = vmatpush1.msra.mxu0 %v19
    %77 = vmatprep.subr.mxu0 0.0
    %78 = vmatpush1.msra.mxu0 %v18
    %79 = vmatprep.subr.mxu0 0.0
    %80 = vmatpush1.msra.mxu0 %v17
    %81 = vmatprep.subr.mxu0 0.0
    %82 = vmatpush2.msra.mxu0 %v48
    %83 = vmatprep.subr.mxu0 0.0
    %84 = vmatpush2.msra.mxu0 %v47
    %85 = vmatprep.subr.mxu0 0.0
    %86 = vmatpush2.msra.mxu0 %v46
    %87 = vmatprep.subr.mxu0 0.0
    %88 = vmatpush2.msra.mxu0 %v45
    %89 = vmatprep.subr.mxu0 0.0
    %90 = vmatpush2.msra.mxu0 %v44
    %91 = vmatprep.subr.mxu0 0.0
    %92 = vmatpush2.msra.mxu0 %v43
    %93 = vmatprep.subr.mxu0 0.0
    %94 = vmatpush2.msra.mxu0 %v42
    %95 = vmatprep.subr.mxu0 0.0
    %96 = vmatpush2.msra.mxu0 %v41
    %97 = vmatprep.subr.mxu0 0.0
    %98 = vmatpush2.msra.mxu0 %v40
    %99 = vmatprep.subr.mxu0 0.0
    %100 = vmatpush2.msra.mxu0 %v39
    %101 = vmatprep.subr.mxu0 0.0
    %102 = vmatpush2.msra.mxu0 %v38
    %103 = vmatprep.subr.mxu0 0.0
    %104 = vmatpush2.msra.mxu0 %v37
    %105 = vmatprep.subr.mxu0 0.0
    %106 = vmatpush2.msra.mxu0 %v36
    %107 = vmatprep.subr.mxu0 0.0
    %108 = vmatpush2.msra.mxu0 %v35
    %109 = vmatprep.subr.mxu0 0.0
    %110 = vmatpush2.msra.mxu0 %v34
    %111 = vmatprep.subr.mxu0 0.0
    %112 = vmatpush2.msra.mxu0 %v33
    %113 = vmatprep.mubr.f32.mxu0 %v16
    %114 = vmatmul.mubr.f32.gmra.mxu0 %v15
    %v115 = vpop.f32.mrf.mxu0
    %v116 = vadd.f32 0.0, %v115
    %v117 = vpop.f32.mrf.mxu0
    %118 = vdwg.mxu0
    %v119 = vld [vmem:[%s2] sm:$0x1]
    %v121 = vlaneseq
    %v122 = vshrl.u32 %v121, 7
    %v123 = vsub.s32 0, %v122
    %v124 = vrot.slane %v119, %v123
    %v126 = vmul.f32 %v116, %v124
    %vm127 = vcmask 244736
    %128 = vst.msk [vmem:[#allocation2] sm:$0xff] %vm127, %v126
    // Predicated region
    $region14: #{tpu_custom_call.1} parent=1 // pred_check
      _
    $region15: #{tpu_custom_call.1} parent=1 // pred_check_branch
      %130 = sbr.rel (0) target = $region17
    $region16: #{tpu_custom_call.1} parent=1 // pred_region
      %s132 = ssub.s32 128, 128
      %133 = vsyncadd [#allocation3], %s132
      %s135 = sshll.u32 [#allocation2], 4
      %s136 = int_to_ptr.vmem [resolvable:$true] %s135
      %138 = dma.vmem_to_hbm [thread:$0]  %s136, 128, %s3, [#allocation3]
    $region17: #{tpu_custom_call.1} parent=1 // pred_fallthru
      _
    // Predicated region
    $region18: #{tpu_custom_call.1} parent=1 // pred_check
      _
    $region19: #{tpu_custom_call.1} parent=1 // pred_check_branch
      %140 = sbr.rel (0) target = $region21
    $region20: #{tpu_custom_call.1} parent=1 // pred_region
      %141 = dma.done [#allocation3], 128
    $region21: #{tpu_custom_call.1} parent=1 // pred_fallthru
      _
    %142 = vsyncpa [#allocation3], 1

// kernel: tpu_custom_call.1
$region0: #{tpu_custom_call.1}
  #allocation0 [shape = 'u32[]', space=smem, size = 0x4, offset = 0x4, fixed_abs, tag = 'smem constant byte address 0x4 - core index']
  #allocation1 [shape = 'u32[144,128]{1,0:T(1,128)}', space=vmem, size = 0x12000, scoped, tag = 'internal scratch']
  %s0 = inlined_call_operand.vmem [shape: f32[8,256], index: 0, kind: input, shape index: {}]
  %s1 = inlined_call_operand.vmem [shape: f32[256,30], index: 1, kind: input, shape index: {}]
  %s2 = inlined_call_operand.vmem [shape: f32[1,30], index: 2, kind: input, shape index: {}]
  %s3 = inlined_call_operand.hbm [shape: f32[8,30], index: 3, kind: output, shape index: {}]
  %s4 = sld [smem:[#allocation0]]
  $region22: #{tpu_custom_call.1} parent=0
    _
  %s6 = ssub.s32 1, %s4
  %s7 = scalar_select 0, %s6, %s4
  $region1: #{tpu_custom_call.1} parent=0
    #allocation2 [shape = 'u8[4096]{0}', space=vmem, size = 0x1000, scoped, tag = 'output window, operand 0, single buffered']
    #allocation3 [shape = 's32[1]{0}', space=sflag, size = 0x4, scoped, tag = 'scoped memory for tpu_custom_call.1']
    %8 = vsyncpa [#allocation3], 0
    // Predicated region
    $region2: #{tpu_custom_call.1} parent=1 // pred_check
      _
    $region3: #{tpu_custom_call.1} parent=1 // pred_check_branch
      %10 = sbr.rel (0) target = $region5
    $region4: #{tpu_custom_call.1} parent=1 // pred_region
      _
    $region5: #{tpu_custom_call.1} parent=1 // pred_fallthru
      _
    // Predicated region
    $region6: #{tpu_custom_call.1} parent=1 // pred_check
      _
    $region7: #{tpu_custom_call.1} parent=1 // pred_check_branch
      %12 = sbr.rel (0) target = $region9
    $region8: #{tpu_custom_call.1} parent=1 // pred_region
      _
    $region9: #{tpu_custom_call.1} parent=1 // pred_fallthru
      _
    // Predicated region
    $region10: #{tpu_custom_call.1} parent=1 // pred_check
      _
    $region11: #{tpu_custom_call.1} parent=1 // pred_check_branch
      %14 = sbr.rel (0) target = $region13
    $region12: #{tpu_custom_call.1} parent=1 // pred_region
      _
    $region13: #{tpu_custom_call.1} parent=1 // pred_fallthru
      _
    %v15 = vld [vmem:[%s0] sm:$0xff]
    %v16 = vld [vmem:[%s0 + $0x8] sm:$0xff]
    %v17 = vld [vmem:[%s1] sm:$0xff]
    %v18 = vld [vmem:[%s1 + $0x8] sm:$0xff]
    %v19 = vld [vmem:[%s1 + $0x10] sm:$0xff]
    %v20 = vld [vmem:[%s1 + $0x18] sm:$0xff]
    %v21 = vld [vmem:[%s1 + $0x20] sm:$0xff]
    %v22 = vld [vmem:[%s1 + $0x28] sm:$0xff]
    %v23 = vld [vmem:[%s1 + $0x30] sm:$0xff]
    %v24 = vld [vmem:[%s1 + $0x38] sm:$0xff]
    %v25 = vld [vmem:[%s1 + $0x40] sm:$0xff]
    %v26 = vld [vmem:[%s1 + $0x48] sm:$0xff]
    %v27 = vld [vmem:[%s1 + $0x50] sm:$0xff]
    %v28 = vld [vmem:[%s1 + $0x58] sm:$0xff]
    %v29 = vld [vmem:[%s1 + $0x60] sm:$0xff]
    %v30 = vld [vmem:[%s1 + $0x68] sm:$0xff]
    %v31 = vld [vmem:[%s1 + $0x70] sm:$0xff]
    %v32 = vld [vmem:[%s1 + $0x78] sm:$0xff]
    %v33 = vld [vmem:[%s1 + $0x80] sm:$0xff]
    %v34 = vld [vmem:[%s1 + $0x88] sm:$0xff]
    %v35 = vld [vmem:[%s1 + $0x90] sm:$0xff]
    %v36 = vld [vmem:[%s1 + $0x98] sm:$0xff]
    %v37 = vld [vmem:[%s1 + $0xa0] sm:$0xff]
    %v38 = vld [vmem:[%s1 + $0xa8] sm:$0xff]
    %v39 = vld [vmem:[%s1 + $0xb0] sm:$0xff]
    %v40 = vld [vmem:[%s1 + $0xb8] sm:$0xff]
    %v41 = vld [vmem:[%s1 + $0xc0] sm:$0xff]
    %v42 = vld [vmem:[%s1 + $0xc8] sm:$0xff]
    %v43 = vld [vmem:[%s1 + $0xd0] sm:$0xff]
    %v44 = vld [vmem:[%s1 + $0xd8] sm:$0xff]
    %v45 = vld [vmem:[%s1 + $0xe0] sm:$0xff]
    %v46 = vld [vmem:[%s1 + $0xe8] sm:$0xff]
    %v47 = vld [vmem:[%s1 + $0xf0] sm:$0xff]
    %v48 = vld [vmem:[%s1 + $0xf8] sm:$0xff]
    %49 = vmatprep.subr.mxu0 0.0
    %50 = vmatpush1.msra.mxu0 %v32
    %51 = vmatprep.subr.mxu0 0.0
    %52 = vmatpush1.msra.mxu0 %v31
    %53 = vmatprep.subr.mxu0 0.0
    %54 = vmatpush1.msra.mxu0 %v30
    %55 = vmatprep.subr.mxu0 0.0
    %56 = vmatpush1.msra.mxu0 %v29
    %57 = vmatprep.subr.mxu0 0.0
    %58 = vmatpush1.msra.mxu0 %v28
    %59 = vmatprep.subr.mxu0 0.0
    %60 = vmatpush1.msra.mxu0 %v27
    %61 = vmatprep.subr.mxu0 0.0
    %62 = vmatpush1.msra.mxu0 %v26
    %63 = vmatprep.subr.mxu0 0.0
    %64 = vmatpush1.msra.mxu0 %v25
    %65 = vmatprep.subr.mxu0 0.0
    %66 = vmatpush1.msra.mxu0 %v24
    %67 = vmatprep.subr.mxu0 0.0
    %68 = vmatpush1.msra.mxu0 %v23
    %69 = vmatprep.subr.mxu0 0.0
    %70 = vmatpush1.msra.mxu0 %v22
    %71 = vmatprep.subr.mxu0 0.0
    %72 = vmatpush1.msra.mxu0 %v21
    %73 = vmatprep.subr.mxu0 0.0
    %74 = vmatpush1.msra.mxu0 %v20
    %75 = vmatprep.subr.mxu0 0.0
    %76 = vmatpush1.msra.mxu0 %v19
    %77 = vmatprep.subr.mxu0 0.0
    %78 = vmatpush1.msra.mxu0 %v18
    %79 = vmatprep.subr.mxu0 0.0
    %80 = vmatpush1.msra.mxu0 %v17
    %81 = vmatprep.subr.mxu0 0.0
    %82 = vmatpush2.msra.mxu0 %v48
    %83 = vmatprep.subr.mxu0 0.0
    %84 = vmatpush2.msra.mxu0 %v47
    %85 = vmatprep.subr.mxu0 0.0
    %86 = vmatpush2.msra.mxu0 %v46
    %87 = vmatprep.subr.mxu0 0.0
    %88 = vmatpush2.msra.mxu0 %v45
    %89 = vmatprep.subr.mxu0 0.0
    %90 = vmatpush2.msra.mxu0 %v44
    %91 = vmatprep.subr.mxu0 0.0
    %92 = vmatpush2.msra.mxu0 %v43
    %93 = vmatprep.subr.mxu0 0.0
    %94 = vmatpush2.msra.mxu0 %v42
    %95 = vmatprep.subr.mxu0 0.0
    %96 = vmatpush2.msra.mxu0 %v41
    %97 = vmatprep.subr.mxu0 0.0
    %98 = vmatpush2.msra.mxu0 %v40
    %99 = vmatprep.subr.mxu0 0.0
    %100 = vmatpush2.msra.mxu0 %v39
    %101 = vmatprep.subr.mxu0 0.0
    %102 = vmatpush2.msra.mxu0 %v38
    %103 = vmatprep.subr.mxu0 0.0
    %104 = vmatpush2.msra.mxu0 %v37
    %105 = vmatprep.subr.mxu0 0.0
    %106 = vmatpush2.msra.mxu0 %v36
    %107 = vmatprep.subr.mxu0 0.0
    %108 = vmatpush2.msra.mxu0 %v35
    %109 = vmatprep.subr.mxu0 0.0
    %110 = vmatpush2.msra.mxu0 %v34
    %111 = vmatprep.subr.mxu0 0.0
    %112 = vmatpush2.msra.mxu0 %v33
    %113 = vmatprep.mubr.f32.mxu0 %v16
    %114 = vmatmul.mubr.f32.gmra.mxu0 %v15
    %v115 = vpop.f32.mrf.mxu0
    %v116 = vadd.f32 0.0, %v115
    %v117 = vpop.f32.mrf.mxu0
    %118 = vdwg.mxu0
    %v119 = vld [vmem:[%s2] sm:$0x1]
    %v121 = vlaneseq
    %v122 = vshrl.u32 %v121, 7
    %v123 = vsub.s32 0, %v122
    %v124 = vrot.slane %v119, %v123
    %v126 = vmul.f32 %v116, %v124
    %vm127 = vcmask 244736
    %128 = vst.msk [vmem:[#allocation2] sm:$0xff] %vm127, %v126
    // Predicated region
    $region14: #{tpu_custom_call.1} parent=1 // pred_check
      _
    $region15: #{tpu_custom_call.1} parent=1 // pred_check_branch
      %130 = sbr.rel (0) target = $region17
    $region16: #{tpu_custom_call.1} parent=1 // pred_region
      %s132 = ssub.s32 128, 128
      %133 = vsyncadd [#allocation3], %s132
      %s135 = sshll.u32 [#allocation2], 4
      %s136 = int_to_ptr.vmem [resolvable:$true] %s135
      %138 = dma.vmem_to_hbm [thread:$0]  %s136, 128, %s3, [#allocation3]
    $region17: #{tpu_custom_call.1} parent=1 // pred_fallthru
      _
    // Predicated region
    $region18: #{tpu_custom_call.1} parent=1 // pred_check
      _
    $region19: #{tpu_custom_call.1} parent=1 // pred_check_branch
      %140 = sbr.rel (0) target = $region21
    $region20: #{tpu_custom_call.1} parent=1 // pred_region
      %141 = dma.done [#allocation3], 128
    $region21: #{tpu_custom_call.1} parent=1 // pred_fallthru
      _
    %142 = vsyncpa [#allocation3], 1

</llo_original>
